<compile_context>
chip_gen: v6e
topology: v6e:2x2x1
jax: 0.10.0
libtpu: 0.0.40
codegen_flags: <defaults>
</compile_context>

<pallas_src>
import functools

import jax
import jax.numpy as jnp
from jax.experimental import pallas as pl
from jax.experimental.pallas import tpu as pltpu

IN_FEATURES = 28 * 28          # 784
HIDDEN = 200                   # logical hidden size (matches nn.Linear(784, 200))
HIDDEN_PAD = 256               # lane/MXU-aligned padded hidden size
OUT_FEATURES = 10


def _round_up(n, m):
    return ((n + m - 1) // m) * m


def _choose_tile_m(batch):
    # Large MXU-aligned tiles when the batch is big enough to pipeline;
    # minimal 8-row-aligned tile for tiny (serving-style) batches.
    if batch >= 512:
        return 512
    return max(8, _round_up(batch, 8))


def netfull_kernel(x_ref, w1_ref, b1_ref, w2_ref, b2_ref, out_ref):
    # x_ref:  (TM, 784) bf16     w1_ref: (784, 256) bf16   b1_ref: (1, 256) f32
    # w2_ref: (256, 10) f32      b2_ref: (1, 10)  f32      out_ref: (TM, 10) f32

    # fc1 (bf16 operands, f32 MXU accumulate) + bias + tanh (f32 on VPU/EUP)
    h = jnp.dot(x_ref[...], w1_ref[...], preferred_element_type=jnp.float32)
    h = jnp.tanh(h + b1_ref[...])

    # fc2 (f32)
    logits = jnp.dot(h, w2_ref[...], preferred_element_type=jnp.float32) + b2_ref[...]

    # log_softmax along the last axis, numerically stable, f32 throughout
    m = jnp.max(logits, axis=-1, keepdims=True)
    shifted = logits - m
    lse = jnp.log(jnp.sum(jnp.exp(shifted), axis=-1, keepdims=True))
    out_ref[...] = (shifted - lse).astype(out_ref.dtype)


def prepare_params(w1, b1, w2, b2):
    """Pad hidden 200->256 and cast W1 to bf16 (DMA-dominant operand).

    Padded b1 entries are 0 and padded W2 rows are 0, so tanh(0)=0 padded
    hidden units contribute nothing to the logits: outputs are unchanged.
    """
    pad = HIDDEN_PAD - w1.shape[1]
    w1p = jnp.pad(w1, ((0, 0), (0, pad))).astype(jnp.bfloat16)
    b1p = jnp.pad(b1, ((0, 0), (0, pad))).astype(jnp.float32)
    w2p = jnp.pad(w2, ((0, pad), (0, 0))).astype(jnp.float32)
    b2p = b2.astype(jnp.float32)
    return w1p, b1p, w2p, b2p


@jax.jit
def netfull_forward(x_nchw, w1p, b1p, w2p, b2p):
    # Glue: flatten NCHW -> (B, 784), exactly like x.view(-1, 28*28); bf16 for DMA.
    B = x_nchw.shape[0]
    x2d = x_nchw.reshape(B, IN_FEATURES).astype(jnp.bfloat16)

    tm = _choose_tile_m(B)
    b_pad = _round_up(B, tm)
    if b_pad != B:
        x2d = jnp.pad(x2d, ((0, b_pad - B), (0, 0)))
    grid = (b_pad // tm,)

    cost = pl.CostEstimate(
        flops=2 * b_pad * (IN_FEATURES * HIDDEN_PAD + HIDDEN_PAD * OUT_FEATURES),
        transcendentals=b_pad * (HIDDEN_PAD + OUT_FEATURES),
        bytes_accessed=(
            b_pad * IN_FEATURES * 2            # x (bf16)
            + IN_FEATURES * HIDDEN_PAD * 2     # w1 (bf16)
            + HIDDEN_PAD * 4                   # b1
            + HIDDEN_PAD * OUT_FEATURES * 4    # w2
            + OUT_FEATURES * 4                 # b2
            + b_pad * OUT_FEATURES * 4         # out
        ),
    )

    out = pl.pallas_call(
        netfull_kernel,
        out_shape=jax.ShapeDtypeStruct((b_pad, OUT_FEATURES), jnp.float32),
        grid=grid,
        in_specs=[
            pl.BlockSpec((tm, IN_FEATURES), lambda i: (i, 0)),          # x tile
            pl.BlockSpec((IN_FEATURES, HIDDEN_PAD), lambda i: (0, 0)),  # W1 (resident)
            pl.BlockSpec((1, HIDDEN_PAD), lambda i: (0, 0)),            # b1 (resident)
            pl.BlockSpec((HIDDEN_PAD, OUT_FEATURES), lambda i: (0, 0)), # W2 (resident)
            pl.BlockSpec((1, OUT_FEATURES), lambda i: (0, 0)),          # b2 (resident)
        ],
        out_specs=pl.BlockSpec((tm, OUT_FEATURES), lambda i: (i, 0)),
        compiler_params=pltpu.CompilerParams(
            dimension_semantics=("parallel",),
        ),
        cost_estimate=cost,
    )(x2d, w1p, b1p, w2p, b2p)

    return out[:B]


def init_params(key):
    # Deterministic init mimicking nn.Linear default: U(-1/sqrt(fan_in), 1/sqrt(fan_in))
    k1, k2, k3, k4 = jax.random.split(key, 4)
    in1, out1 = IN_FEATURES, HIDDEN
    in2, out2 = HIDDEN, OUT_FEATURES
    bound1 = 1.0 / jnp.sqrt(in1)
    bound2 = 1.0 / jnp.sqrt(in2)
    # stored pre-transposed: (in_features, out_features)
    w1 = jax.random.uniform(k1, (in1, out1), jnp.float32, -bound1, bound1)
    b1 = jax.random.uniform(k2, (1, out1), jnp.float32, -bound1, bound1)
    w2 = jax.random.uniform(k3, (in2, out2), jnp.float32, -bound2, bound2)
    b2 = jax.random.uniform(k4, (1, out2), jnp.float32, -bound2, bound2)
    return w1, b1, w2, b2


def _reference_forward(x_nchw, w1, b1, w2, b2):
    # Pure-JAX f32 reference matching the PyTorch module.
    x2d = x_nchw.reshape(x_nchw.shape[0], IN_FEATURES).astype(jnp.float32)
    h = jnp.tanh(x2d @ w1 + b1)
    logits = h @ w2 + b2
    return jax.nn.log_softmax(logits, axis=-1)


if __name__ == "__main__":
    key = jax.random.PRNGKey(0)
    pkey, xkey = jax.random.split(key)
    w1, b1, w2, b2 = init_params(pkey)
    w1p, b1p, w2p, b2p = prepare_params(w1, b1, w2, b2)

    # MNIST-like input: batch=4, NCHW (4, 1, 28, 28)
    x = jax.random.normal(xkey, (4, 1, 28, 28), jnp.float32)

    out = netfull_forward(x, w1p, b1p, w2p, b2p)
    jax.block_until_ready(out)

    assert out.shape == (4, 10)
    # log_softmax rows must exp-sum to 1
    row_sums = jnp.exp(out).sum(axis=-1)
    assert jnp.allclose(row_sums, 1.0, atol=1e-5)
    # match the f32 reference (tolerance covers bf16 storage of x / W1)
    ref = _reference_forward(x, w1, b1, w2, b2)
    assert jnp.allclose(out, ref, atol=5e-2), float(jnp.max(jnp.abs(out - ref)))

    print("KERNEL_OK")
</pallas_src>

<mosaic_0001>
module attributes {stable_mosaic.version = 11 : i64} {
  func.func @netfull_kernel(%arg0: i32, %arg1: memref<8x784xbf16, #tpu.memory_space<vmem>>, %arg2: memref<784x256xbf16, #tpu.memory_space<vmem>>, %arg3: memref<1x256xf32, #tpu.memory_space<vmem>>, %arg4: memref<256x10xf32, #tpu.memory_space<vmem>>, %arg5: memref<1x10xf32, #tpu.memory_space<vmem>>, %arg6: memref<8x10xf32, #tpu.memory_space<vmem>>) attributes {dimension_semantics = [#tpu.dimension_semantics<parallel>], iteration_bounds = array<i64: 1>, scalar_prefetch = 0 : i64, scratch_operands = 0 : i64, tpu.core_type = #tpu.core_type<tc>, window_params = [{transform_indices = @transform_0, window_bounds = array<i64: 8, 784>}, {pipeline_mode = #tpu.pipeline_mode<synchronous>, transform_indices = @transform_1, window_bounds = array<i64: 784, 256>}, {pipeline_mode = #tpu.pipeline_mode<synchronous>, transform_indices = @transform_2, window_bounds = array<i64: 1, 256>}, {pipeline_mode = #tpu.pipeline_mode<synchronous>, transform_indices = @transform_3, window_bounds = array<i64: 256, 10>}, {pipeline_mode = #tpu.pipeline_mode<synchronous>, transform_indices = @transform_4, window_bounds = array<i64: 1, 10>}, {transform_indices = @transform_5, window_bounds = array<i64: 8, 10>}]} {
    %c0 = arith.constant 0 : index
    %c0_0 = arith.constant 0 : index
    %0 = vector.load %arg1[%c0, %c0_0] : memref<8x784xbf16, #tpu.memory_space<vmem>>, vector<8x784xbf16>
    %c0_1 = arith.constant 0 : index
    %c0_2 = arith.constant 0 : index
    %1 = vector.load %arg2[%c0_1, %c0_2] : memref<784x256xbf16, #tpu.memory_space<vmem>>, vector<784x256xbf16>
    %cst = arith.constant dense<0.000000e+00> : vector<8x256xf32>
    %2 = tpu.matmul %0, %1, %cst {dimension_numbers = #tpu.dot_dimension_numbers<[1], [0], [0], [1], [0, 0, 1, 1], [], []>} : vector<8x784xbf16>, vector<784x256xbf16>, vector<8x256xf32> -> vector<8x256xf32>
    %c0_3 = arith.constant 0 : index
    %c0_4 = arith.constant 0 : index
    %3 = vector.load %arg3[%c0_3, %c0_4] : memref<1x256xf32, #tpu.memory_space<vmem>>, vector<1x256xf32>
    %4 = vector.broadcast %3 : vector<1x256xf32> to vector<8x256xf32>
    %5 = arith.addf %2, %4 : vector<8x256xf32>
    %6 = math.tanh %5 : vector<8x256xf32>
    %c0_5 = arith.constant 0 : index
    %c0_6 = arith.constant 0 : index
    %7 = vector.load %arg4[%c0_5, %c0_6] : memref<256x10xf32, #tpu.memory_space<vmem>>, vector<256x10xf32>
    %cst_7 = arith.constant dense<0.000000e+00> : vector<8x10xf32>
    %8 = tpu.matmul %6, %7, %cst_7 {dimension_numbers = #tpu.dot_dimension_numbers<[1], [0], [0], [1], [0, 0, 1, 1], [], []>} : vector<8x256xf32>, vector<256x10xf32>, vector<8x10xf32> -> vector<8x10xf32>
    %c0_8 = arith.constant 0 : index
    %c0_9 = arith.constant 0 : index
    %9 = vector.load %arg5[%c0_8, %c0_9] : memref<1x10xf32, #tpu.memory_space<vmem>>, vector<1x10xf32>
    %10 = vector.broadcast %9 : vector<1x10xf32> to vector<8x10xf32>
    %11 = arith.addf %8, %10 : vector<8x10xf32>
    %cst_10 = arith.constant dense<0xFF800000> : vector<8xf32>
    %12 = vector.multi_reduction <maximumf>, %11, %cst_10 [1] : vector<8x10xf32> to vector<8xf32>
    %13 = vector.shape_cast %12 : vector<8xf32> to vector<8x1xf32>
    %14 = vector.broadcast %13 : vector<8x1xf32> to vector<8x10xf32>
    %15 = arith.subf %11, %14 : vector<8x10xf32>
    %16 = math.exp %15 : vector<8x10xf32>
    %cst_11 = arith.constant dense<0.000000e+00> : vector<8xf32>
    %17 = vector.multi_reduction <add>, %16, %cst_11 [1] : vector<8x10xf32> to vector<8xf32>
    %18 = vector.shape_cast %17 : vector<8xf32> to vector<8x1xf32>
    %19 = math.log %18 : vector<8x1xf32>
    %20 = vector.broadcast %19 : vector<8x1xf32> to vector<8x10xf32>
    %21 = arith.subf %15, %20 : vector<8x10xf32>
    %c0_12 = arith.constant 0 : index
    %c0_13 = arith.constant 0 : index
    %22 = vector.load %arg6[%c0_12, %c0_13] : memref<8x10xf32, #tpu.memory_space<vmem>>, vector<8x10xf32>
    tpu.vector_store %arg6[%c0_12, %c0_13], %21 {strides = array<i32>} : memref<8x10xf32, #tpu.memory_space<vmem>>, vector<8x10xf32>,
    return
  }
  func.func @transform_0(%arg0: i32) -> (i32, i32) {
    %c0_i32 = arith.constant 0 : i32
    %c0_i32_0 = arith.constant 0 : i32
    return %arg0, %c0_i32 : i32, i32
  }
  func.func @transform_1(%arg0: i32) -> (i32, i32) {
    %c0_i32 = arith.constant 0 : i32
    %c0_i32_0 = arith.constant 0 : i32
    %c0_i32_1 = arith.constant 0 : i32
    return %c0_i32, %c0_i32_0 : i32, i32
  }
  func.func @transform_2(%arg0: i32) -> (i32, i32) {
    %c0_i32 = arith.constant 0 : i32
    %c0_i32_0 = arith.constant 0 : i32
    %c0_i32_1 = arith.constant 0 : i32
    return %c0_i32, %c0_i32_0 : i32, i32
  }
  func.func @transform_3(%arg0: i32) -> (i32, i32) {
    %c0_i32 = arith.constant 0 : i32
    %c0_i32_0 = arith.constant 0 : i32
    %c0_i32_1 = arith.constant 0 : i32
    return %c0_i32, %c0_i32_0 : i32, i32
  }
  func.func @transform_4(%arg0: i32) -> (i32, i32) {
    %c0_i32 = arith.constant 0 : i32
    %c0_i32_0 = arith.constant 0 : i32
    %c0_i32_1 = arith.constant 0 : i32
    return %c0_i32, %c0_i32_0 : i32, i32
  }
  func.func @transform_5(%arg0: i32) -> (i32, i32) {
    %c0_i32 = arith.constant 0 : i32
    %c0_i32_0 = arith.constant 0 : i32
    return %arg0, %c0_i32 : i32, i32
  }
}

</mosaic_0001>

<llo_original>
// kernel: netfull_forward.1
$region0: #{netfull_forward.1}
  #allocation0 [shape = 'u32[]', space=smem, size = 0x4, offset = 0x4, fixed_abs, tag = 'smem constant byte address 0x4 - core index']
  #allocation1 [shape = 'u32[144,128]{1,0:T(1,128)}', space=vmem, size = 0x12000, scoped, tag = 'internal scratch']
  %s0 = inlined_call_operand.vmem [shape: bf16[8,784], index: 0, kind: input, shape index: {}]
  %s1 = inlined_call_operand.hbm [shape: bf16[784,256], index: 1, kind: input, shape index: {}]
  %s2 = inlined_call_operand.vmem [shape: f32[1,256], index: 2, kind: input, shape index: {}]
  %s3 = inlined_call_operand.vmem [shape: f32[256,10], index: 3, kind: input, shape index: {}]
  %s4 = inlined_call_operand.vmem [shape: f32[1,10], index: 4, kind: input, shape index: {}]
  %s5 = inlined_call_operand.vmem [shape: f32[8,10], index: 5, kind: output, shape index: {}]
  %s6 = sld [smem:[#allocation0]]
  $region34: #{netfull_forward.1} parent=0
    _
  %s8 = ssub.s32 1, %s6
  %s9 = scalar_select 0, %s8, %s6
  $region1: #{netfull_forward.1} parent=0
    #allocation2 [shape = 'u8[401408]{0}', space=vmem, size = 0x62000, scoped, tag = 'input window, operand 1, single buffered']
    #allocation3 [shape = 's32[1]{0}', space=sflag, size = 0x4, scoped, tag = 'scoped memory for netfull_forward.1']
    %10 = vsyncpa [#allocation3], 0
    // Predicated region
    $region2: #{netfull_forward.1} parent=1 // pred_check
      _
    $region3: #{netfull_forward.1} parent=1 // pred_check_branch
      %12 = sbr.rel (0) target = $region5
    $region4: #{netfull_forward.1} parent=1 // pred_region
      _
    $region5: #{netfull_forward.1} parent=1 // pred_fallthru
      _
    // Predicated region
    $region6: #{netfull_forward.1} parent=1 // pred_check
      _
    $region7: #{netfull_forward.1} parent=1 // pred_check_branch
      %14 = sbr.rel (0) target = $region9
    $region8: #{netfull_forward.1} parent=1 // pred_region
      %s16 = ssub.s32 12544, 12544
      %17 = vsyncadd [#allocation3], %s16
      %s18 = sshll.u32 [#allocation2], 4
      %s19 = int_to_ptr.vmem [resolvable:$true] %s18
      %24 = dma.hbm_to_vmem [thread:$0]  %s1, 12544, %s19, [#allocation3], 128, 128, 8
    $region9: #{netfull_forward.1} parent=1 // pred_fallthru
      _
    // Predicated region
    $region10: #{netfull_forward.1} parent=1 // pred_check
      _
    $region11: #{netfull_forward.1} parent=1 // pred_check_branch
      %26 = sbr.rel (0) target = $region13
    $region12: #{netfull_forward.1} parent=1 // pred_region
      _
    $region13: #{netfull_forward.1} parent=1 // pred_fallthru
      _
    // Predicated region
    $region14: #{netfull_forward.1} parent=1 // pred_check
      _
    $region15: #{netfull_forward.1} parent=1 // pred_check_branch
      %28 = sbr.rel (0) target = $region17
    $region16: #{netfull_forward.1} parent=1 // pred_region
      _
    $region17: #{netfull_forward.1} parent=1 // pred_fallthru
      _
    // Predicated region
    $region18: #{netfull_forward.1} parent=1 // pred_check
      _
    $region19: #{netfull_forward.1} parent=1 // pred_check_branch
      %30 = sbr.rel (0) target = $region21
    $region20: #{netfull_forward.1} parent=1 // pred_region
      _
    $region21: #{netfull_forward.1} parent=1 // pred_fallthru
      _
    // Predicated region
    $region22: #{netfull_forward.1} parent=1 // pred_check
      _
    $region23: #{netfull_forward.1} parent=1 // pred_check_branch
      %32 = sbr.rel (0) target = $region25
    $region24: #{netfull_forward.1} parent=1 // pred_region
      %33 = dma.done [#allocation3], 12544
    $region25: #{netfull_forward.1} parent=1 // pred_fallthru
      _
    %v35 = vld [vmem:[%s0] sm:$0xff]
    %v36 = vld [vmem:[%s0 + $0x8] sm:$0xff]
    %v37 = vld [vmem:[%s0 + $0x10] sm:$0xff]
    %v38 = vld [vmem:[%s0 + $0x18] sm:$0xf]
    %v39 = vld [vmem:[#allocation2] sm:$0xff]
    %v40 = vld [vmem:[#allocation2 + $0x8] sm:$0xff]
    %v41 = vld [vmem:[#allocation2 + $0x10] sm:$0xff]
    %v42 = vld [vmem:[#allocation2 + $0x18] sm:$0xff]
    %v43 = vld [vmem:[#allocation2 + $0x20] sm:$0xff]
    %v44 = vld [vmem:[#allocation2 + $0x28] sm:$0xff]
    %v45 = vld [vmem:[#allocation2 + $0x30] sm:$0xff]
    %v46 = vld [vmem:[#allocation2 + $0x38] sm:$0xff]
    %v47 = vld [vmem:[#allocation2 + $0x40] sm:$0xff]
    %v48 = vld [vmem:[#allocation2 + $0x48] sm:$0xff]
    %v49 = vld [vmem:[#allocation2 + $0x50] sm:$0xff]
    %v50 = vld [vmem:[#allocation2 + $0x58] sm:$0xff]
    %v51 = vld [vmem:[#allocation2 + $0x60] sm:$0xff]
    %v52 = vld [vmem:[#allocation2 + $0x68] sm:$0xff]
    %v53 = vld [vmem:[#allocation2 + $0x70] sm:$0xff]
    %v54 = vld [vmem:[#allocation2 + $0x78] sm:$0xff]
    %v55 = vld [vmem:[#allocation2 + $0x80] sm:$0xff]
    %v56 = vld [vmem:[#allocation2 + $0x88] sm:$0xff]
    %v57 = vld [vmem:[#allocation2 + $0x90] sm:$0xff]
    %v58 = vld [vmem:[#allocation2 + $0x98] sm:$0xff]
    %v59 = vld [vmem:[#allocation2 + $0xa0] sm:$0xff]
    %v60 = vld [vmem:[#allocation2 + $0xa8] sm:$0xff]
    %v61 = vld [vmem:[#allocation2 + $0xb0] sm:$0xff]
    %v62 = vld [vmem:[#allocation2 + $0xb8] sm:$0xff]
    %v63 = vld [vmem:[#allocation2 + $0xc0] sm:$0xff]
    %v64 = vld [vmem:[#allocation2 + $0xc8] sm:$0xff]
    %v65 = vld [vmem:[#allocation2 + $0xd0] sm:$0xff]
    %v66 = vld [vmem:[#allocation2 + $0xd8] sm:$0xff]
    %v67 = vld [vmem:[#allocation2 + $0xe0] sm:$0xff]
    %v68 = vld [vmem:[#allocation2 + $0xe8] sm:$0xff]
    %v69 = vld [vmem:[#allocation2 + $0xf0] sm:$0xff]
    %v70 = vld [vmem:[#allocation2 + $0xf8] sm:$0xff]
    %v71 = vld [vmem:[#allocation2 + $0x100] sm:$0xff]
    %v72 = vld [vmem:[#allocation2 + $0x108] sm:$0xff]
    %v73 = vld [vmem:[#allocation2 + $0x110] sm:$0xff]
    %v74 = vld [vmem:[#allocation2 + $0x118] sm:$0xff]
    %v75 = vld [vmem:[#allocation2 + $0x120] sm:$0xff]
    %v76 = vld [vmem:[#allocation2 + $0x128] sm:$0xff]
    %v77 = vld [vmem:[#allocation2 + $0x130] sm:$0xff]
    %v78 = vld [vmem:[#allocation2 + $0x138] sm:$0xff]
    %v79 = vld [vmem:[#allocation2 + $0x140] sm:$0xff]
    %v80 = vld [vmem:[#allocation2 + $0x148] sm:$0xff]
    %v81 = vld [vmem:[#allocation2 + $0x150] sm:$0xff]
    %v82 = vld [vmem:[#allocation2 + $0x158] sm:$0xff]
    %v83 = vld [vmem:[#allocation2 + $0x160] sm:$0xff]
    %v84 = vld [vmem:[#allocation2 + $0x168] sm:$0xff]
    %v85 = vld [vmem:[#allocation2 + $0x170] sm:$0xff]
    %v86 = vld [vmem:[#allocation2 + $0x178] sm:$0xff]
    %v87 = vld [vmem:[#allocation2 + $0x180] sm:$0xff]
    %v88 = vld [vmem:[#allocation2 + $0x188] sm:$0xff]
    %v89 = vld [vmem:[#allocation2 + $0x190] sm:$0xff]
    %v90 = vld [vmem:[#allocation2 + $0x198] sm:$0xff]
    %v91 = vld [vmem:[#allocation2 + $0x1a0] sm:$0xff]
    %v92 = vld [vmem:[#allocation2 + $0x1a8] sm:$0xff]
    %v93 = vld [vmem:[#allocation2 + $0x1b0] sm:$0xff]
    %v94 = vld [vmem:[#allocation2 + $0x1b8] sm:$0xff]
    %v95 = vld [vmem:[#allocation2 + $0x1c0] sm:$0xff]
    %v96 = vld [vmem:[#allocation2 + $0x1c8] sm:$0xff]
    %v97 = vld [vmem:[#allocation2 + $0x1d0] sm:$0xff]
    %v98 = vld [vmem:[#allocation2 + $0x1d8] sm:$0xff]
    %v99 = vld [vmem:[#allocation2 + $0x1e0] sm:$0xff]
    %v100 = vld [vmem:[#allocation2 + $0x1e8] sm:$0xff]
    %v101 = vld [vmem:[#allocation2 + $0x1f0] sm:$0xff]
    %v102 = vld [vmem:[#allocation2 + $0x1f8] sm:$0xff]
    %v103 = vld [vmem:[#allocation2 + $0x200] sm:$0xff]
    %v104 = vld [vmem:[#allocation2 + $0x208] sm:$0xff]
    %v105 = vld [vmem:[#allocation2 + $0x210] sm:$0xff]
    %v106 = vld [vmem:[#allocation2 + $0x218] sm:$0xff]
    %v107 = vld [vmem:[#allocation2 + $0x220] sm:$0xff]
    %v108 = vld [vmem:[#allocation2 + $0x228] sm:$0xff]
    %v109 = vld [vmem:[#allocation2 + $0x230] sm:$0xff]
    %v110 = vld [vmem:[#allocation2 + $0x238] sm:$0xff]
    %v111 = vld [vmem:[#allocation2 + $0x240] sm:$0xff]
    %v112 = vld [vmem:[#allocation2 + $0x248] sm:$0xff]
    %v113 = vld [vmem:[#allocation2 + $0x250] sm:$0xff]
    %v114 = vld [vmem:[#allocation2 + $0x258] sm:$0xff]
    %v115 = vld [vmem:[#allocation2 + $0x260] sm:$0xff]
    %v116 = vld [vmem:[#allocation2 + $0x268] sm:$0xff]
    %v117 = vld [vmem:[#allocation2 + $0x270] sm:$0xff]
    %v118 = vld [vmem:[#allocation2 + $0x278] sm:$0xff]
    %v119 = vld [vmem:[#allocation2 + $0x280] sm:$0xff]
    %v120 = vld [vmem:[#allocation2 + $0x288] sm:$0xff]
    %v121 = vld [vmem:[#allocation2 + $0x290] sm:$0xff]
    %v122 = vld [vmem:[#allocation2 + $0x298] sm:$0xff]
    %v123 = vld [vmem:[#allocation2 + $0x2a0] sm:$0xff]
    %v124 = vld [vmem:[#allocation2 + $0x2a8] sm:$0xff]
    %v125 = vld [vmem:[#allocation2 + $0x2b0] sm:$0xff]
    %v126 = vld [vmem:[#allocation2 + $0x2b8] sm:$0xff]
    %v127 = vld [vmem:[#allocation2 + $0x2c0] sm:$0xff]
    %v128 = vld [vmem:[#allocation2 + $0x2c8] sm:$0xff]
    %v129 = vld [vmem:[#allocation2 + $0x2d0] sm:$0xff]
    %v130 = vld [vmem:[#allocation2 + $0x2d8] sm:$0xff]
    %v131 = vld [vmem:[#allocation2 + $0x2e0] sm:$0xff]
    %v132 = vld [vmem:[#allocation2 + $0x2e8] sm:$0xff]
    %v133 = vld [vmem:[#allocation2 + $0x2f0] sm:$0xff]
    %v134 = vld [vmem:[#allocation2 + $0x2f8] sm:$0xff]
    %v135 = vld [vmem:[#allocation2 + $0x300] sm:$0xff]
    %v136 = vld [vmem:[#allocation2 + $0x308] sm:$0xff]
    %v137 = vld [vmem:[%s2] sm:$0x3]
    %v139 = vlaneseq
    %v140 = vshrl.u32 %v139, 7
    %v141 = vsub.s32 0, %v140
    %v142 = vrot.slane %v137, %v141
    %v143 = vlaneseq
    %v144 = vshrl.u32 %v143, 7
    %v145 = vsub.s32 1, %v144
    %v146 = vrot.slane %v137, %v145
    %v153 = vunpack.c.l.b16 %v35
    %v154 = vunpack.c.h.b16 %v35
    %v155 = vunpack.c.l.b16 %v36
    %v156 = vunpack.c.h.b16 %v36
    %v157 = vunpack.c.l.b16 %v37
    %v158 = vunpack.c.h.b16 %v37
    %v159 = vunpack.c.l.b16 %v38
    %v160 = vpack.c.b16 %v153, %v153
    %v161 = vpack.c.b16 %v154, %v154
    %v162 = vpack.c.b16 %v155, %v155
    %v163 = vpack.c.b16 %v156, %v156
    %v164 = vpack.c.b16 %v157, %v157
    %v165 = vpack.c.b16 %v158, %v158
    %v166 = vpack.c.b16 %v159, %v159
    %v271 = vunpack.c.l.b16 %v39
    %v272 = vunpack.c.h.b16 %v39
    %v273 = vunpack.c.l.b16 %v40
    %v274 = vunpack.c.h.b16 %v40
    %v275 = vunpack.c.l.b16 %v41
    %v276 = vunpack.c.h.b16 %v41
    %v277 = vunpack.c.l.b16 %v42
    %v278 = vunpack.c.h.b16 %v42
    %v279 = vunpack.c.l.b16 %v43
    %v280 = vunpack.c.h.b16 %v43
    %v281 = vunpack.c.l.b16 %v44
    %v282 = vunpack.c.h.b16 %v44
    %v283 = vunpack.c.l.b16 %v45
    %v284 = vunpack.c.h.b16 %v45
    %v285 = vunpack.c.l.b16 %v46
    %v286 = vunpack.c.h.b16 %v46
    %v287 = vunpack.c.l.b16 %v47
    %v288 = vunpack.c.h.b16 %v47
    %v289 = vunpack.c.l.b16 %v48
    %v290 = vunpack.c.h.b16 %v48
    %v291 = vunpack.c.l.b16 %v49
    %v292 = vunpack.c.h.b16 %v49
    %v293 = vunpack.c.l.b16 %v50
    %v294 = vunpack.c.h.b16 %v50
    %v295 = vunpack.c.l.b16 %v51
    %v296 = vunpack.c.h.b16 %v51
    %v297 = vunpack.c.l.b16 %v52
    %v298 = vunpack.c.h.b16 %v52
    %v299 = vunpack.c.l.b16 %v53
    %v300 = vunpack.c.h.b16 %v53
    %v301 = vunpack.c.l.b16 %v54
    %v302 = vunpack.c.h.b16 %v54
    %v303 = vunpack.c.l.b16 %v55
    %v304 = vunpack.c.h.b16 %v55
    %v305 = vunpack.c.l.b16 %v56
    %v306 = vunpack.c.h.b16 %v56
    %v307 = vunpack.c.l.b16 %v57
    %v308 = vunpack.c.h.b16 %v57
    %v309 = vunpack.c.l.b16 %v58
    %v310 = vunpack.c.h.b16 %v58
    %v311 = vunpack.c.l.b16 %v59
    %v312 = vunpack.c.h.b16 %v59
    %v313 = vunpack.c.l.b16 %v60
    %v314 = vunpack.c.h.b16 %v60
    %v315 = vunpack.c.l.b16 %v61
    %v316 = vunpack.c.h.b16 %v61
    %v317 = vunpack.c.l.b16 %v62
    %v318 = vunpack.c.h.b16 %v62
    %v319 = vunpack.c.l.b16 %v63
    %v320 = vunpack.c.h.b16 %v63
    %v321 = vunpack.c.l.b16 %v64
    %v322 = vunpack.c.h.b16 %v64
    %v323 = vunpack.c.l.b16 %v65
    %v324 = vunpack.c.h.b16 %v65
    %v325 = vunpack.c.l.b16 %v66
    %v326 = vunpack.c.h.b16 %v66
    %v327 = vunpack.c.l.b16 %v67
    %v328 = vunpack.c.h.b16 %v67
    %v329 = vunpack.c.l.b16 %v68
    %v330 = vunpack.c.h.b16 %v68
    %v331 = vunpack.c.l.b16 %v69
    %v332 = vunpack.c.h.b16 %v69
    %v333 = vunpack.c.l.b16 %v70
    %v334 = vunpack.c.h.b16 %v70
    %v335 = vunpack.c.l.b16 %v71
    %v336 = vunpack.c.h.b16 %v71
    %v337 = vunpack.c.l.b16 %v72
    %v338 = vunpack.c.h.b16 %v72
    %v339 = vunpack.c.l.b16 %v73
    %v340 = vunpack.c.h.b16 %v73
    %v341 = vunpack.c.l.b16 %v74
    %v342 = vunpack.c.h.b16 %v74
    %v343 = vunpack.c.l.b16 %v75
    %v344 = vunpack.c.h.b16 %v75
    %v345 = vunpack.c.l.b16 %v76
    %v346 = vunpack.c.h.b16 %v76
    %v347 = vunpack.c.l.b16 %v77
    %v348 = vunpack.c.h.b16 %v77
    %v349 = vunpack.c.l.b16 %v78
    %v350 = vunpack.c.h.b16 %v78
    %v351 = vunpack.c.l.b16 %v79
    %v352 = vunpack.c.h.b16 %v79
    %v353 = vunpack.c.l.b16 %v80
    %v354 = vunpack.c.h.b16 %v80
    %v355 = vunpack.c.l.b16 %v81
    %v356 = vunpack.c.h.b16 %v81
    %v357 = vunpack.c.l.b16 %v82
    %v358 = vunpack.c.h.b16 %v82
    %v359 = vunpack.c.l.b16 %v83
    %v360 = vunpack.c.h.b16 %v83
    %v361 = vunpack.c.l.b16 %v84
    %v362 = vunpack.c.h.b16 %v84
    %v363 = vunpack.c.l.b16 %v85
    %v364 = vunpack.c.h.b16 %v85
    %v365 = vunpack.c.l.b16 %v86
    %v366 = vunpack.c.h.b16 %v86
    %v367 = vunpack.c.l.b16 %v87
    %v368 = vunpack.c.h.b16 %v87
    %v369 = vunpack.c.l.b16 %v88
    %v370 = vunpack.c.h.b16 %v88
    %v371 = vunpack.c.l.b16 %v89
    %v372 = vunpack.c.h.b16 %v89
    %v373 = vunpack.c.l.b16 %v90
    %v374 = vunpack.c.h.b16 %v90
    %v375 = vunpack.c.l.b16 %v91
    %v376 = vunpack.c.h.b16 %v91
    %v377 = vunpack.c.l.b16 %v92
    %v378 = vunpack.c.h.b16 %v92
    %v379 = vunpack.c.l.b16 %v93
    %v380 = vunpack.c.h.b16 %v93
    %v381 = vunpack.c.l.b16 %v94
    %v382 = vunpack.c.h.b16 %v94
    %v383 = vunpack.c.l.b16 %v95
    %v384 = vunpack.c.h.b16 %v95
    %v385 = vunpack.c.l.b16 %v96
    %v386 = vunpack.c.h.b16 %v96
    %v387 = vunpack.c.l.b16 %v97
    %v388 = vunpack.c.h.b16 %v97
    %v389 = vunpack.c.l.b16 %v98
    %v390 = vunpack.c.h.b16 %v98
    %v391 = vunpack.c.l.b16 %v99
    %v392 = vunpack.c.h.b16 %v99
    %v393 = vunpack.c.l.b16 %v100
    %v394 = vunpack.c.h.b16 %v100
    %v395 = vunpack.c.l.b16 %v101
    %v396 = vunpack.c.h.b16 %v101
    %v397 = vunpack.c.l.b16 %v102
    %v398 = vunpack.c.h.b16 %v102
    %v399 = vunpack.c.l.b16 %v103
    %v400 = vunpack.c.h.b16 %v103
    %v401 = vunpack.c.l.b16 %v104
    %v402 = vunpack.c.h.b16 %v104
    %v403 = vunpack.c.l.b16 %v105
    %v404 = vunpack.c.h.b16 %v105
    %v405 = vunpack.c.l.b16 %v106
    %v406 = vunpack.c.h.b16 %v106
    %v407 = vunpack.c.l.b16 %v107
    %v408 = vunpack.c.h.b16 %v107
    %v409 = vunpack.c.l.b16 %v108
    %v410 = vunpack.c.h.b16 %v108
    %v411 = vunpack.c.l.b16 %v109
    %v412 = vunpack.c.h.b16 %v109
    %v413 = vunpack.c.l.b16 %v110
    %v414 = vunpack.c.h.b16 %v110
    %v415 = vunpack.c.l.b16 %v111
    %v416 = vunpack.c.h.b16 %v111
    %v417 = vunpack.c.l.b16 %v112
    %v418 = vunpack.c.h.b16 %v112
    %v419 = vunpack.c.l.b16 %v113
    %v420 = vunpack.c.h.b16 %v113
    %v421 = vunpack.c.l.b16 %v114
    %v422 = vunpack.c.h.b16 %v114
    %v423 = vunpack.c.l.b16 %v115
    %v424 = vunpack.c.h.b16 %v115
    %v425 = vunpack.c.l.b16 %v116
    %v426 = vunpack.c.h.b16 %v116
    %v427 = vunpack.c.l.b16 %v117
    %v428 = vunpack.c.h.b16 %v117
    %v429 = vunpack.c.l.b16 %v118
    %v430 = vunpack.c.h.b16 %v118
    %v431 = vunpack.c.l.b16 %v119
    %v432 = vunpack.c.h.b16 %v119
    %v433 = vunpack.c.l.b16 %v120
    %v434 = vunpack.c.h.b16 %v120
    %v435 = vunpack.c.l.b16 %v121
    %v436 = vunpack.c.h.b16 %v121
    %v437 = vunpack.c.l.b16 %v122
    %v438 = vunpack.c.h.b16 %v122
    %v439 = vunpack.c.l.b16 %v123
    %v440 = vunpack.c.h.b16 %v123
    %v441 = vunpack.c.l.b16 %v124
    %v442 = vunpack.c.h.b16 %v124
    %v443 = vunpack.c.l.b16 %v125
    %v444 = vunpack.c.h.b16 %v125
    %v445 = vunpack.c.l.b16 %v126
    %v446 = vunpack.c.h.b16 %v126
    %v447 = vunpack.c.l.b16 %v127
    %v448 = vunpack.c.h.b16 %v127
    %v449 = vunpack.c.l.b16 %v128
    %v450 = vunpack.c.h.b16 %v128
    %v451 = vunpack.c.l.b16 %v129
    %v452 = vunpack.c.h.b16 %v129
    %v453 = vunpack.c.l.b16 %v130
    %v454 = vunpack.c.h.b16 %v130
    %v455 = vunpack.c.l.b16 %v131
    %v456 = vunpack.c.h.b16 %v131
    %v457 = vunpack.c.l.b16 %v132
    %v458 = vunpack.c.h.b16 %v132
    %v459 = vunpack.c.l.b16 %v133
    %v460 = vunpack.c.h.b16 %v133
    %v461 = vunpack.c.l.b16 %v134
    %v462 = vunpack.c.h.b16 %v134
    %v463 = vunpack.c.l.b16 %v135
    %v464 = vunpack.c.h.b16 %v135
    %v465 = vunpack.c.l.b16 %v136
    %v466 = vunpack.c.h.b16 %v136
    %v467 = vpack.c.b16 %v273, %v271
    %v468 = vpack.c.b16 %v274, %v272
    %v469 = vpack.c.b16 %v277, %v275
    %v470 = vpack.c.b16 %v278, %v276
    %v471 = vpack.c.b16 %v281, %v279
    %v472 = vpack.c.b16 %v282, %v280
    %v473 = vpack.c.b16 %v285, %v283
    %v474 = vpack.c.b16 %v286, %v284
    %v475 = vpack.c.b16 %v289, %v287
    %v476 = vpack.c.b16 %v290, %v288
    %v477 = vpack.c.b16 %v293, %v291
    %v478 = vpack.c.b16 %v294, %v292
    %v479 = vpack.c.b16 %v297, %v295
    %v480 = vpack.c.b16 %v298, %v296
    %v481 = vpack.c.b16 %v301, %v299
    %v482 = vpack.c.b16 %v302, %v300
    %v483 = vpack.c.b16 %v305, %v303
    %v484 = vpack.c.b16 %v306, %v304
    %v485 = vpack.c.b16 %v309, %v307
    %v486 = vpack.c.b16 %v310, %v308
    %v487 = vpack.c.b16 %v313, %v311
    %v488 = vpack.c.b16 %v314, %v312
    %v489 = vpack.c.b16 %v317, %v315
    %v490 = vpack.c.b16 %v318, %v316
    %v491 = vpack.c.b16 %v321, %v319
    %v492 = vpack.c.b16 %v322, %v320
    %v493 = vpack.c.b16 %v325, %v323
    %v494 = vpack.c.b16 %v326, %v324
    %v495 = vpack.c.b16 %v329, %v327
    %v496 = vpack.c.b16 %v330, %v328
    %v497 = vpack.c.b16 %v333, %v331
    %v498 = vpack.c.b16 %v334, %v332
    %v499 = vpack.c.b16 %v337, %v335
    %v500 = vpack.c.b16 %v338, %v336
    %v501 = vpack.c.b16 %v341, %v339
    %v502 = vpack.c.b16 %v342, %v340
    %v503 = vpack.c.b16 %v345, %v343
    %v504 = vpack.c.b16 %v346, %v344
    %v505 = vpack.c.b16 %v349, %v347
    %v506 = vpack.c.b16 %v350, %v348
    %v507 = vpack.c.b16 %v353, %v351
    %v508 = vpack.c.b16 %v354, %v352
    %v509 = vpack.c.b16 %v357, %v355
    %v510 = vpack.c.b16 %v358, %v356
    %v511 = vpack.c.b16 %v361, %v359
    %v512 = vpack.c.b16 %v362, %v360
    %v513 = vpack.c.b16 %v365, %v363
    %v514 = vpack.c.b16 %v366, %v364
    %v515 = vpack.c.b16 %v369, %v367
    %v516 = vpack.c.b16 %v370, %v368
    %v517 = vpack.c.b16 %v373, %v371
    %v518 = vpack.c.b16 %v374, %v372
    %v519 = vpack.c.b16 %v377, %v375
    %v520 = vpack.c.b16 %v378, %v376
    %v521 = vpack.c.b16 %v381, %v379
    %v522 = vpack.c.b16 %v382, %v380
    %v523 = vpack.c.b16 %v385, %v383
    %v524 = vpack.c.b16 %v386, %v384
    %v525 = vpack.c.b16 %v389, %v387
    %v526 = vpack.c.b16 %v390, %v388
    %v527 = vpack.c.b16 %v393, %v391
    %v528 = vpack.c.b16 %v394, %v392
    %v529 = vpack.c.b16 %v397, %v395
    %v530 = vpack.c.b16 %v398, %v396
    %v531 = vpack.c.b16 %v401, %v399
    %v532 = vpack.c.b16 %v402, %v400
    %v533 = vpack.c.b16 %v405, %v403
    %v534 = vpack.c.b16 %v406, %v404
    %v535 = vpack.c.b16 %v409, %v407
    %v536 = vpack.c.b16 %v410, %v408
    %v537 = vpack.c.b16 %v413, %v411
    %v538 = vpack.c.b16 %v414, %v412
    %v539 = vpack.c.b16 %v417, %v415
    %v540 = vpack.c.b16 %v418, %v416
    %v541 = vpack.c.b16 %v421, %v419
    %v542 = vpack.c.b16 %v422, %v420
    %v543 = vpack.c.b16 %v425, %v423
    %v544 = vpack.c.b16 %v426, %v424
    %v545 = vpack.c.b16 %v429, %v427
    %v546 = vpack.c.b16 %v430, %v428
    %v547 = vpack.c.b16 %v433, %v431
    %v548 = vpack.c.b16 %v434, %v432
    %v549 = vpack.c.b16 %v437, %v435
    %v550 = vpack.c.b16 %v438, %v436
    %v551 = vpack.c.b16 %v441, %v439
    %v552 = vpack.c.b16 %v442, %v440
    %v553 = vpack.c.b16 %v445, %v443
    %v554 = vpack.c.b16 %v446, %v444
    %v555 = vpack.c.b16 %v449, %v447
    %v556 = vpack.c.b16 %v450, %v448
    %v557 = vpack.c.b16 %v453, %v451
    %v558 = vpack.c.b16 %v454, %v452
    %v559 = vpack.c.b16 %v457, %v455
    %v560 = vpack.c.b16 %v458, %v456
    %v561 = vpack.c.b16 %v461, %v459
    %v562 = vpack.c.b16 %v462, %v460
    %v563 = vpack.c.b16 %v465, %v463
    %v564 = vpack.c.b16 %v466, %v464
    %vm663 = vcmask 130048
    %v665 = vsel %vm663, %v166, 0
    %667 = vmatprep.subr.bf16.mxu0 %v482
    %668 = vmatpush1.bf16.msra.mxu0 %v481
    %669 = vmatprep.subr.bf16.mxu0 %v480
    %670 = vmatpush1.bf16.msra.mxu0 %v479
    %671 = vmatprep.subr.bf16.mxu0 %v478
    %672 = vmatpush1.bf16.msra.mxu0 %v477
    %673 = vmatprep.subr.bf16.mxu0 %v476
    %674 = vmatpush1.bf16.msra.mxu0 %v475
    %675 = vmatprep.subr.bf16.mxu0 %v474
    %676 = vmatpush1.bf16.msra.mxu0 %v473
    %677 = vmatprep.subr.bf16.mxu0 %v472
    %678 = vmatpush1.bf16.msra.mxu0 %v471
    %679 = vmatprep.subr.bf16.mxu0 %v470
    %680 = vmatpush1.bf16.msra.mxu0 %v469
    %681 = vmatprep.subr.bf16.mxu0 %v468
    %682 = vmatpush1.bf16.msra.mxu0 %v467
    %683 = vmatprep.subr.bf16.mxu0 %v498
    %684 = vmatpush2.bf16.msra.mxu0 %v497
    %685 = vmatprep.subr.bf16.mxu0 %v496
    %686 = vmatpush2.bf16.msra.mxu0 %v495
    %687 = vmatprep.subr.bf16.mxu0 %v494
    %688 = vmatpush2.bf16.msra.mxu0 %v493
    %689 = vmatprep.subr.bf16.mxu0 %v492
    %690 = vmatpush2.bf16.msra.mxu0 %v491
    %691 = vmatprep.subr.bf16.mxu0 %v490
    %692 = vmatpush2.bf16.msra.mxu0 %v489
    %693 = vmatprep.subr.bf16.mxu0 %v488
    %694 = vmatpush2.bf16.msra.mxu0 %v487
    %695 = vmatprep.subr.bf16.mxu0 %v486
    %696 = vmatpush2.bf16.msra.mxu0 %v485
    %697 = vmatprep.subr.bf16.mxu0 %v484
    %698 = vmatpush2.bf16.msra.mxu0 %v483
    %699 = vmatprep.mubr.bf16.mxu0 %v161
    %700 = vmatmul.mubr.bf16.gmra.mxu0 %v160
    %v701 = vpop.f32.mrf.mxu0
    %v702 = vadd.f32 %v142, %v701
    %v703 = vpop.f32.mrf.mxu0
    %v704 = vadd.f32 %v146, %v703
    %v705 = vpop.f32.mrf.mxu0
    %v706 = vpop.f32.mrf.mxu0
    %707 = vdwg.mxu0
    %708 = vmatprep.subr.bf16.mxu0 %v514
    %709 = vmatpush1.bf16.msra.mxu0 %v513
    %710 = vmatprep.subr.bf16.mxu0 %v512
    %711 = vmatpush1.bf16.msra.mxu0 %v511
    %712 = vmatprep.subr.bf16.mxu0 %v510
    %713 = vmatpush1.bf16.msra.mxu0 %v509
    %714 = vmatprep.subr.bf16.mxu0 %v508
    %715 = vmatpush1.bf16.msra.mxu0 %v507
    %716 = vmatprep.subr.bf16.mxu0 %v506
    %717 = vmatpush1.bf16.msra.mxu0 %v505
    %718 = vmatprep.subr.bf16.mxu0 %v504
    %719 = vmatpush1.bf16.msra.mxu0 %v503
    %720 = vmatprep.subr.bf16.mxu0 %v502
    %721 = vmatpush1.bf16.msra.mxu0 %v501
    %722 = vmatprep.subr.bf16.mxu0 %v500
    %723 = vmatpush1.bf16.msra.mxu0 %v499
    %724 = vmatprep.subr.bf16.mxu0 %v530
    %725 = vmatpush2.bf16.msra.mxu0 %v529
    %726 = vmatprep.subr.bf16.mxu0 %v528
    %727 = vmatpush2.bf16.msra.mxu0 %v527
    %728 = vmatprep.subr.bf16.mxu0 %v526
    %729 = vmatpush2.bf16.msra.mxu0 %v525
    %730 = vmatprep.subr.bf16.mxu0 %v524
    %731 = vmatpush2.bf16.msra.mxu0 %v523
    %732 = vmatprep.subr.bf16.mxu0 %v522
    %733 = vmatpush2.bf16.msra.mxu0 %v521
    %734 = vmatprep.subr.bf16.mxu0 %v520
    %735 = vmatpush2.bf16.msra.mxu0 %v519
    %736 = vmatprep.subr.bf16.mxu0 %v518
    %737 = vmatpush2.bf16.msra.mxu0 %v517
    %738 = vmatprep.subr.bf16.mxu0 %v516
    %739 = vmatpush2.bf16.msra.mxu0 %v515
    %740 = vmatprep.mubr.bf16.mxu0 %v163
    %741 = vmatmul.mubr.bf16.gmra.mxu0 %v162
    %v742 = vpop.f32.mrf.mxu0
    %v743 = vadd.f32 %v702, %v742
    %v744 = vpop.f32.mrf.mxu0
    %v745 = vadd.f32 %v704, %v744
    %v746 = vpop.f32.mrf.mxu0
    %v747 = vpop.f32.mrf.mxu0
    %748 = vdwg.mxu0
    %749 = vmatprep.subr.bf16.mxu0 %v546
    %750 = vmatpush1.bf16.msra.mxu0 %v545
    %751 = vmatprep.subr.bf16.mxu0 %v544
    %752 = vmatpush1.bf16.msra.mxu0 %v543
    %753 = vmatprep.subr.bf16.mxu0 %v542
    %754 = vmatpush1.bf16.msra.mxu0 %v541
    %755 = vmatprep.subr.bf16.mxu0 %v540
    %756 = vmatpush1.bf16.msra.mxu0 %v539
    %757 = vmatprep.subr.bf16.mxu0 %v538
    %758 = vmatpush1.bf16.msra.mxu0 %v537
    %759 = vmatprep.subr.bf16.mxu0 %v536
    %760 = vmatpush1.bf16.msra.mxu0 %v535
    %761 = vmatprep.subr.bf16.mxu0 %v534
    %762 = vmatpush1.bf16.msra.mxu0 %v533
    %763 = vmatprep.subr.bf16.mxu0 %v532
    %764 = vmatpush1.bf16.msra.mxu0 %v531
    %765 = vmatprep.subr.bf16.mxu0 %v562
    %766 = vmatpush2.bf16.msra.mxu0 %v561
    %767 = vmatprep.subr.bf16.mxu0 %v560
    %768 = vmatpush2.bf16.msra.mxu0 %v559
    %769 = vmatprep.subr.bf16.mxu0 %v558
    %770 = vmatpush2.bf16.msra.mxu0 %v557
    %771 = vmatprep.subr.bf16.mxu0 %v556
    %772 = vmatpush2.bf16.msra.mxu0 %v555
    %773 = vmatprep.subr.bf16.mxu0 %v554
    %774 = vmatpush2.bf16.msra.mxu0 %v553
    %775 = vmatprep.subr.bf16.mxu0 %v552
    %776 = vmatpush2.bf16.msra.mxu0 %v551
    %777 = vmatprep.subr.bf16.mxu0 %v550
    %778 = vmatpush2.bf16.msra.mxu0 %v549
    %779 = vmatprep.subr.bf16.mxu0 %v548
    %780 = vmatpush2.bf16.msra.mxu0 %v547
    %781 = vmatprep.mubr.bf16.mxu0 %v165
    %782 = vmatmul.mubr.bf16.gmra.mxu0 %v164
    %v783 = vpop.f32.mrf.mxu0
    %v784 = vadd.f32 %v743, %v783
    %v785 = vpop.f32.mrf.mxu0
    %v786 = vadd.f32 %v745, %v785
    %v787 = vpop.f32.mrf.mxu0
    %v788 = vpop.f32.mrf.mxu0
    %789 = vdwg.mxu0
    %790 = vmatprep.subr.bf16.mxu0 0
    %791 = vmatpush1.bf16.msra.mxu0 0
    %792 = vmatprep.subr.bf16.mxu0 0
    %793 = vmatpush1.bf16.msra.mxu0 0
    %794 = vmatprep.subr.bf16.mxu0 0
    %795 = vmatpush1.bf16.msra.mxu0 0
    %796 = vmatprep.subr.bf16.mxu0 0
    %797 = vmatpush1.bf16.msra.mxu0 0
    %798 = vmatprep.subr.bf16.mxu0 0
    %799 = vmatpush1.bf16.msra.mxu0 0
    %800 = vmatprep.subr.bf16.mxu0 0
    %801 = vmatpush1.bf16.msra.mxu0 0
    %802 = vmatprep.subr.bf16.mxu0 0
    %803 = vmatpush1.bf16.msra.mxu0 0
    %804 = vmatprep.subr.bf16.mxu0 %v564
    %805 = vmatpush1.bf16.msra.mxu0 %v563
    %806 = vmatprep.subr.bf16.mxu0 0
    %807 = vmatpush2.bf16.msra.mxu0 0
    %808 = vmatprep.subr.bf16.mxu0 0
    %809 = vmatpush2.bf16.msra.mxu0 0
    %810 = vmatprep.subr.bf16.mxu0 0
    %811 = vmatpush2.bf16.msra.mxu0 0
    %812 = vmatprep.subr.bf16.mxu0 0
    %813 = vmatpush2.bf16.msra.mxu0 0
    %814 = vmatprep.subr.bf16.mxu0 0
    %815 = vmatpush2.bf16.msra.mxu0 0
    %816 = vmatprep.subr.bf16.mxu0 0
    %817 = vmatpush2.bf16.msra.mxu0 0
    %818 = vmatprep.subr.bf16.mxu0 0
    %819 = vmatpush2.bf16.msra.mxu0 0
    %820 = vmatprep.subr.bf16.mxu0 0
    %821 = vmatpush2.bf16.msra.mxu0 0
    %822 = vmatprep.mubr.bf16.mxu0 0
    %823 = vmatmul.mubr.bf16.gmra.mxu0 %v665
    %v824 = vpop.f32.mrf.mxu0
    %v825 = vadd.f32 %v784, %v824
    %v826 = vpop.f32.mrf.mxu0
    %v827 = vadd.f32 %v786, %v826
    %v828 = vpop.f32.mrf.mxu0
    %v829 = vpop.f32.mrf.mxu0
    %830 = vdwg.mxu0
    %v831 = vtanh.pop %v825
    %v832 = vtanh.pop %v827
    %v833 = vld [vmem:[%s3] sm:$0xff]
    %v834 = vld [vmem:[%s3 + $0x8] sm:$0xff]
    %v835 = vld [vmem:[%s3 + $0x10] sm:$0xff]
    %v836 = vld [vmem:[%s3 + $0x18] sm:$0xff]
    %v837 = vld [vmem:[%s3 + $0x20] sm:$0xff]
    %v838 = vld [vmem:[%s3 + $0x28] sm:$0xff]
    %v839 = vld [vmem:[%s3 + $0x30] sm:$0xff]
    %v840 = vld [vmem:[%s3 + $0x38] sm:$0xff]
    %v841 = vld [vmem:[%s3 + $0x40] sm:$0xff]
    %v842 = vld [vmem:[%s3 + $0x48] sm:$0xff]
    %v843 = vld [vmem:[%s3 + $0x50] sm:$0xff]
    %v844 = vld [vmem:[%s3 + $0x58] sm:$0xff]
    %v845 = vld [vmem:[%s3 + $0x60] sm:$0xff]
    %v846 = vld [vmem:[%s3 + $0x68] sm:$0xff]
    %v847 = vld [vmem:[%s3 + $0x70] sm:$0xff]
    %v848 = vld [vmem:[%s3 + $0x78] sm:$0xff]
    %v849 = vld [vmem:[%s3 + $0x80] sm:$0xff]
    %v850 = vld [vmem:[%s3 + $0x88] sm:$0xff]
    %v851 = vld [vmem:[%s3 + $0x90] sm:$0xff]
    %v852 = vld [vmem:[%s3 + $0x98] sm:$0xff]
    %v853 = vld [vmem:[%s3 + $0xa0] sm:$0xff]
    %v854 = vld [vmem:[%s3 + $0xa8] sm:$0xff]
    %v855 = vld [vmem:[%s3 + $0xb0] sm:$0xff]
    %v856 = vld [vmem:[%s3 + $0xb8] sm:$0xff]
    %v857 = vld [vmem:[%s3 + $0xc0] sm:$0xff]
    %v858 = vld [vmem:[%s3 + $0xc8] sm:$0xff]
    %v859 = vld [vmem:[%s3 + $0xd0] sm:$0xff]
    %v860 = vld [vmem:[%s3 + $0xd8] sm:$0xff]
    %v861 = vld [vmem:[%s3 + $0xe0] sm:$0xff]
    %v862 = vld [vmem:[%s3 + $0xe8] sm:$0xff]
    %v863 = vld [vmem:[%s3 + $0xf0] sm:$0xff]
    %v864 = vld [vmem:[%s3 + $0xf8] sm:$0xff]
    %v865 = vld [vmem:[%s4] sm:$0x1]
    %v867 = vlaneseq
    %v868 = vshrl.u32 %v867, 7
    %v869 = vsub.s32 0, %v868
    %v870 = vrot.slane %v865, %v869
    %872 = vmatprep.subr.mxu0 0.0
    %873 = vmatpush1.msra.mxu0 %v848
    %874 = vmatprep.subr.mxu0 0.0
    %875 = vmatpush1.msra.mxu0 %v847
    %876 = vmatprep.subr.mxu0 0.0
    %877 = vmatpush1.msra.mxu0 %v846
    %878 = vmatprep.subr.mxu0 0.0
    %879 = vmatpush1.msra.mxu0 %v845
    %880 = vmatprep.subr.mxu0 0.0
    %881 = vmatpush1.msra.mxu0 %v844
    %882 = vmatprep.subr.mxu0 0.0
    %883 = vmatpush1.msra.mxu0 %v843
    %884 = vmatprep.subr.mxu0 0.0
    %885 = vmatpush1.msra.mxu0 %v842
    %886 = vmatprep.subr.mxu0 0.0
    %887 = vmatpush1.msra.mxu0 %v841
    %888 = vmatprep.subr.mxu0 0.0
    %889 = vmatpush1.msra.mxu0 %v840
    %890 = vmatprep.subr.mxu0 0.0
    %891 = vmatpush1.msra.mxu0 %v839
    %892 = vmatprep.subr.mxu0 0.0
    %893 = vmatpush1.msra.mxu0 %v838
    %894 = vmatprep.subr.mxu0 0.0
    %895 = vmatpush1.msra.mxu0 %v837
    %896 = vmatprep.subr.mxu0 0.0
    %897 = vmatpush1.msra.mxu0 %v836
    %898 = vmatprep.subr.mxu0 0.0
    %899 = vmatpush1.msra.mxu0 %v835
    %900 = vmatprep.subr.mxu0 0.0
    %901 = vmatpush1.msra.mxu0 %v834
    %902 = vmatprep.subr.mxu0 0.0
    %903 = vmatpush1.msra.mxu0 %v833
    %904 = vmatprep.subr.mxu0 0.0
    %905 = vmatpush2.msra.mxu0 %v864
    %906 = vmatprep.subr.mxu0 0.0
    %907 = vmatpush2.msra.mxu0 %v863
    %908 = vmatprep.subr.mxu0 0.0
    %909 = vmatpush2.msra.mxu0 %v862
    %910 = vmatprep.subr.mxu0 0.0
    %911 = vmatpush2.msra.mxu0 %v861
    %912 = vmatprep.subr.mxu0 0.0
    %913 = vmatpush2.msra.mxu0 %v860
    %914 = vmatprep.subr.mxu0 0.0
    %915 = vmatpush2.msra.mxu0 %v859
    %916 = vmatprep.subr.mxu0 0.0
    %917 = vmatpush2.msra.mxu0 %v858
    %918 = vmatprep.subr.mxu0 0.0
    %919 = vmatpush2.msra.mxu0 %v857
    %920 = vmatprep.subr.mxu0 0.0
    %921 = vmatpush2.msra.mxu0 %v856
    %922 = vmatprep.subr.mxu0 0.0
    %923 = vmatpush2.msra.mxu0 %v855
    %924 = vmatprep.subr.mxu0 0.0
    %925 = vmatpush2.msra.mxu0 %v854
    %926 = vmatprep.subr.mxu0 0.0
    %927 = vmatpush2.msra.mxu0 %v853
    %928 = vmatprep.subr.mxu0 0.0
    %929 = vmatpush2.msra.mxu0 %v852
    %930 = vmatprep.subr.mxu0 0.0
    %931 = vmatpush2.msra.mxu0 %v851
    %932 = vmatprep.subr.mxu0 0.0
    %933 = vmatpush2.msra.mxu0 %v850
    %934 = vmatprep.subr.mxu0 0.0
    %935 = vmatpush2.msra.mxu0 %v849
    %936 = vmatprep.mubr.f32.mxu0 %v832
    %937 = vmatmul.mubr.f32.gmra.mxu0 %v831
    %v938 = vpop.f32.mrf.mxu0
    %v939 = vadd.f32 %v870, %v938
    %v940 = vpop.f32.mrf.mxu0
    %941 = vdwg.mxu0
    %vm942 = vcmask 80896
    %v943 = vsel %vm942, %v939, -inf
    %944 = vmax.xlane.f32.xlu0 %v943
    %v945 = vpop.xlane.xlu0 %944
    %v946 = vsub.f32 %v939, %v945
    %v947 = vmul.f32 %v946, 1.442695
    %v948 = vpow.pop %v947
    %v949 = vsel %vm942, %v948, 0.0
    %950 = vadd.xlane.f32.xlu0 %v949
    %v951 = vpop.xlane.xlu0 %950
    %v952 = vlog2.pop %v951
    %v953 = vmul.f32 %v952, 0.6931472
    %v954 = vsub.f32 %v946, %v953
    %955 = vst.msk [vmem:[%s5] sm:$0xff] %vm942, %v954
    // Predicated region
    $region26: #{netfull_forward.1} parent=1 // pred_check
      _
    $region27: #{netfull_forward.1} parent=1 // pred_check_branch
      %957 = sbr.rel (0) target = $region29
    $region28: #{netfull_forward.1} parent=1 // pred_region
      _
    $region29: #{netfull_forward.1} parent=1 // pred_fallthru
      _
    // Predicated region
    $region30: #{netfull_forward.1} parent=1 // pred_check
      _
    $region31: #{netfull_forward.1} parent=1 // pred_check_branch
      %959 = sbr.rel (0) target = $region33
    $region32: #{netfull_forward.1} parent=1 // pred_region
      _
    $region33: #{netfull_forward.1} parent=1 // pred_fallthru
      _
    %960 = vsyncpa [#allocation3], 1

</llo_original>
